<compile_context>
chip_gen: v7x
topology: tpu7x:2x2x1
jax: 0.10.0
libtpu: 0.0.40
codegen_flags: <defaults>
</compile_context>

<pallas_src>
import numpy as np
import jax
import jax.numpy as jnp
from jax.experimental import pallas as pl
from jax.experimental.pallas import tpu as pltpu


def _vmem_capacity_bytes():
    try:
        return int(pltpu.get_tpu_info().vmem_capacity_bytes)
    except Exception:
        return 64 * 2 ** 20  # conservative fallback: v7x per-TensorCore VMEM


def _pick_tile_n(n, m, emit_ious, ious_itemsize):
    """Largest lane-dense anchor tile whose double-buffered in/out blocks plus
    (m, tile_n) f32 temporaries stay within ~1/4 of this generation's VMEM."""
    n_pad128 = pl.cdiv(n, 128) * 128
    budget = _vmem_capacity_bytes() // 4
    per_col = (2 * 3 * 4                                        # awh input (w,h,area), x2 buffers
               + (2 * m * ious_itemsize if emit_ious else 0)    # ious output, x2 buffers
               + 8 * m * 4)                                     # live f32 temporaries
    cap = max(128, (budget // per_col) // 128 * 128)
    return int(min(n_pad128, cap, 16384))


def _make_matcher_kernel(n_valid, tile_n, tiles_per_split, padded, emit_ious):
    def kernel(awh_ref, g_ref, *out_refs):
        if emit_ious:
            ious_ref, pmax_ref, pidx_ref = out_refs
        else:
            pmax_ref, pidx_ref = out_refs

        s = pl.program_id(0)                  # anchor-axis split (v7x core split)
        k = pl.program_id(2)                  # anchor tile within split
        gk = s * tiles_per_split + k          # global anchor-tile index

        @pl.when(k == 0)
        def _init():
            pmax_ref[0] = jnp.full(pmax_ref.shape[1:], -jnp.inf, pmax_ref.dtype)
            pidx_ref[0] = jnp.zeros(pidx_ref.shape[1:], pidx_ref.dtype)

        aw = awh_ref[0:1, :]                  # (1, TILE_N) anchor widths
        ah = awh_ref[1:2, :]                  # (1, TILE_N) anchor heights
        aa = awh_ref[2:3, :]                  # (1, TILE_N) anchor areas (precomputed)
        g = g_ref[0]                          # (M, 3) gt width / height / area
        gw = g[:, 0:1]
        gh = g[:, 1:2]
        ga = g[:, 2:3]

        # Both boxes are origin-centred, so the corner-form intersection collapses
        # (bit-identically for f32 inputs) to min-width * min-height, and areas
        # reduce to w*h (precomputed in the wrapper -> no per-element area muls).
        iw = jnp.clip(jnp.minimum(aw, gw), 0.0, 65504.0)        # (M, TILE_N)
        ih = jnp.clip(jnp.minimum(ah, gh), 0.0, 65504.0)
        inter = iw * ih
        union = aa + ga - inter
        # Exact reciprocal keeps the divide off the VALU slots; approx=True would
        # break the 1e-5 parity with the reference true-divide.
        iou = inter * pl.reciprocal(union)

        if emit_ious:
            ious_ref[0] = iou.astype(ious_ref.dtype)            # dense 128-lane stores

        # ---- running first-occurrence argmax over the anchor (lane) axis ----
        def update(vals):
            lane = jax.lax.broadcasted_iota(jnp.int32, vals.shape, 1)
            tile_max = jnp.max(vals, axis=1, keepdims=True)                 # (M, 1)
            tile_arg = jnp.min(jnp.where(vals == tile_max, lane, tile_n),
                               axis=1, keepdims=True) + gk * tile_n         # (M, 1)
            prev = pmax_ref[0]
            better = tile_max > prev
            pidx_ref[0] = jnp.where(better, tile_arg, pidx_ref[0])
            pmax_ref[0] = jnp.where(better, tile_max, prev)

        if padded:
            # Mask padding columns only on tiles that actually contain padding
            # (the last real tile and any fully padded trailing tiles); all other
            # tiles skip the per-element compare/select entirely.
            has_pad = (gk + 1) * tile_n > n_valid

            @pl.when(has_pad)
            def _masked():
                lane = jax.lax.broadcasted_iota(jnp.int32, iou.shape, 1)
                valid = (gk * tile_n + lane) < n_valid
                update(jnp.where(valid, iou, -jnp.inf))

            @pl.when(jnp.logical_not(has_pad))
            def _unmasked():
                update(iou)
        else:
            update(iou)

    return kernel


def matcher_pallas(anchors_list, gt_boxes, *, tile_n=None, n_split=None,
                   emit_ious=True, ious_dtype=jnp.float32, ious_layout="bnm"):
    """Pallas forward for the PyTorch `Matcher` module.

    Returns (matches, ious):
      matches : (B, M) int32 -- first-occurrence argmax over the anchor axis.
      ious    : (B, N, M) f32 when ious_layout == "bnm" (module contract, default;
                costs one extra HBM re-stream for the transpose),
                (B, M, N)     when ious_layout == "bmn" (lane-dense kernel layout,
                no transpose -- preferred when the consumer can take it),
                None          when emit_ious is False (matches-only fast path).
    """
    all_anchors = jnp.concatenate(
        [a.reshape(-1, 2) for a in anchors_list], axis=0).astype(jnp.float32)
    gt_boxes = gt_boxes.astype(jnp.float32)

    n = all_anchors.shape[0]
    b, m, _ = gt_boxes.shape

    ious_itemsize = jnp.dtype(ious_dtype).itemsize
    if tile_n is None:
        tile_n = _pick_tile_n(n, m, emit_ious, ious_itemsize)
    n_tiles = int(pl.cdiv(n, tile_n))

    # v7x has 2 TensorCores per chip: when the batch axis alone cannot feed both
    # (B == 1) split the anchor axis into a leading parallel grid axis and merge
    # the per-split (max, argmax) in the wrapper.  Harmless on v5e/v6e (1 TC).
    if n_split is None:
        n_split = 2 if (b == 1 and n_tiles >= 2) else 1
    n_split = max(1, min(int(n_split), n_tiles))
    tiles_per_split = int(pl.cdiv(n_tiles, n_split))
    n_tiles_total = tiles_per_split * n_split
    n_pad = n_tiles_total * tile_n
    padded = n_pad != n

    # Anchor w / h / area with the big N axis on lanes, zero-padded to the tile
    # grid (padding columns are additionally index-masked inside the argmax).
    aw = all_anchors[:, 0]
    ah = all_anchors[:, 1]
    awh = jnp.pad(jnp.stack([aw, ah, aw * ah], axis=0),
                  ((0, 0), (0, n_pad - n)))                          # (3, N_pad)

    # Single tiny per-batch glue input: gt width / height / area, M on sublanes.
    gw = gt_boxes[:, :, 2] - gt_boxes[:, :, 0]
    gh = gt_boxes[:, :, 3] - gt_boxes[:, :, 1]
    g = jnp.stack([gw, gh, gw * gh], axis=-1)                        # (B, M, 3)

    kernel = _make_matcher_kernel(n, tile_n, tiles_per_split, padded, emit_ious)

    out_shape = []
    out_specs = []
    if emit_ious:
        out_shape.append(jax.ShapeDtypeStruct((b, m, n_pad), ious_dtype))
        out_specs.append(pl.BlockSpec(
            (1, m, tile_n), lambda s, bi, k: (bi, 0, s * tiles_per_split + k)))
    # Partial (max, argmax) per split: these blocks are resident across the k
    # (reduction) axis, so they double as the running-argmax accumulators.
    out_shape += [jax.ShapeDtypeStruct((n_split * b, m, 1), jnp.float32),
                  jax.ShapeDtypeStruct((n_split * b, m, 1), jnp.int32)]
    out_specs += [pl.BlockSpec((1, m, 1), lambda s, bi, k: (s * b + bi, 0, 0)),
                  pl.BlockSpec((1, m, 1), lambda s, bi, k: (s * b + bi, 0, 0))]

    # Scoped VMEM: actual per-tile usage with margin, capped per-generation.
    per_col = 2 * 3 * 4 + (2 * m * ious_itemsize if emit_ious else 0) + 8 * m * 4
    usage = per_col * tile_n + 8 * m * 4 + (1 << 20)
    vmem_limit = int(min(_vmem_capacity_bytes() * 3 // 4,
                         max(2 * usage, 16 * 2 ** 20)))

    outs = pl.pallas_call(
        kernel,
        out_shape=tuple(out_shape),
        grid_spec=pltpu.PrefetchScalarGridSpec(
            num_scalar_prefetch=0,
            grid=(n_split, b, tiles_per_split),
            in_specs=[
                pl.BlockSpec((3, tile_n),
                             lambda s, bi, k: (0, s * tiles_per_split + k)),
                pl.BlockSpec((1, m, 3), lambda s, bi, k: (bi, 0, 0)),
            ],
            out_specs=tuple(out_specs),
        ),
        compiler_params=pltpu.CompilerParams(
            dimension_semantics=("parallel", "parallel", "arbitrary"),
            vmem_limit_bytes=vmem_limit,
        ),
    )(awh, g)

    if emit_ious:
        ious_mn, pmax, pidx = outs
    else:
        pmax, pidx = outs
        ious_mn = None

    pm = pmax[:, :, 0].reshape(n_split, b, m)
    pi = pidx[:, :, 0].reshape(n_split, b, m)
    if n_split == 1:
        matches = pi[0]
    else:
        # Splits cover contiguous, increasing anchor ranges, so the earliest split
        # wins ties (jnp.argmax first-occurrence) == global first-occurrence argmax.
        best = jnp.argmax(pm, axis=0)                                # (B, M)
        matches = jnp.take_along_axis(pi, best[None], axis=0)[0]

    if not emit_ious:
        return matches, None
    ious = ious_mn[:, :, :n]                                         # lane-dense (B, M, N)
    if ious_layout == "bmn":
        return matches, ious
    # Module contract (B, N, M): costs a full extra HBM pass over the IoU tensor.
    return matches, jnp.transpose(ious, (0, 2, 1))


def matcher_reference(anchors_list, gt_boxes):
    """Pure-JAX reference mirroring the PyTorch module exactly."""
    xmin, ymin, xmax, ymax = jnp.split(gt_boxes, 4, axis=-1)
    gtw = xmax - xmin
    gth = ymax - ymin
    shift_gt = jnp.concatenate([-0.5 * gtw, -0.5 * gth, 0.5 * gtw, 0.5 * gth], axis=-1)

    all_anchors = jnp.concatenate([a.reshape(-1, 2) for a in anchors_list], axis=0)
    anchor_boxes = jnp.concatenate([0 * all_anchors, all_anchors], axis=-1)
    x, y, w, h = jnp.split(anchor_boxes, 4, axis=-1)
    anchor_corner = jnp.concatenate(
        [x - w / 2, y - h / 2, x + w / 2, y + h / 2], axis=-1
    )[None]  # (1, N, 4)

    al, at, ar, ab = [t.squeeze(-1) for t in jnp.split(anchor_corner, 4, axis=-1)]
    bl, bt, br, bb = [t.squeeze(-1) for t in jnp.split(shift_gt, 4, axis=-1)]
    left = jnp.maximum(al[..., :, None], bl[..., None, :])
    right = jnp.minimum(ar[..., :, None], br[..., None, :])
    top = jnp.maximum(at[..., :, None], bt[..., None, :])
    bot = jnp.minimum(ab[..., :, None], bb[..., None, :])
    iw = jnp.clip(right - left, 0.0, 65504.0)
    ih = jnp.clip(bot - top, 0.0, 65504.0)
    inter = iw * ih
    area_a = ((ar - al) * (ab - at))[..., :, None]
    area_b = ((br - bl) * (bb - bt))[..., None, :]
    ious = inter / (area_a + area_b - inter)
    matches = jnp.argmax(ious, axis=1)
    return matches, ious


if __name__ == "__main__":
    key = jax.random.PRNGKey(0)
    k1, k2, k3, k4, k5, k6 = jax.random.split(key, 6)

    # ---- Test 1: typical YOLO shapes (3 scales x 3 anchors -> N=9, B=2, M=8),
    #              default module-contract (B, N, M) ious ----------------------
    anchors_list = [
        jax.random.uniform(k1, (1, 3, 2), jnp.float32, 1.0, 4.0),
        jax.random.uniform(k2, (1, 3, 2), jnp.float32, 2.0, 8.0),
        jax.random.uniform(k3, (1, 3, 2), jnp.float32, 4.0, 16.0),
    ]
    B, M = 2, 8
    xy_min = jax.random.uniform(k4, (B, M, 2), jnp.float32, 0.0, 8.0)
    wh = jax.random.uniform(k5, (B, M, 2), jnp.float32, 1.0, 6.0)
    gt_boxes = jnp.concatenate([xy_min, xy_min + wh], axis=-1)

    matches, ious = matcher_pallas(anchors_list, gt_boxes)
    jax.block_until_ready((matches, ious))
    ref_matches, ref_ious = matcher_reference(anchors_list, gt_boxes)
    assert np.allclose(np.asarray(ious), np.asarray(ref_ious), rtol=1e-5, atol=1e-5)
    assert np.array_equal(np.asarray(matches),
                          np.asarray(ref_matches).astype(np.int32))

    # ---- Test 2: B=1, multi-tile, anchor axis split across 2 cores (v7x path),
    #              lane-dense (B, M, N) output (no wrapper transpose) ----------
    anchors2 = [jax.random.uniform(k6, (600, 2), jnp.float32, 0.5, 20.0)]
    B2, M2 = 1, 8
    kx, kw = jax.random.split(jax.random.PRNGKey(1))
    xy2 = jax.random.uniform(kx, (B2, M2, 2), jnp.float32, 0.0, 8.0)
    wh2 = jax.random.uniform(kw, (B2, M2, 2), jnp.float32, 1.0, 12.0)
    gt2 = jnp.concatenate([xy2, xy2 + wh2], axis=-1)

    m2, iou_bmn = matcher_pallas(anchors2, gt2, tile_n=128, n_split=2,
                                 ious_layout="bmn")
    jax.block_until_ready((m2, iou_bmn))
    ref_m2, ref_iou2 = matcher_reference(anchors2, gt2)
    assert np.allclose(np.asarray(iou_bmn),
                       np.asarray(jnp.transpose(ref_iou2, (0, 2, 1))),
                       rtol=1e-5, atol=1e-5)
    assert np.array_equal(np.asarray(m2), np.asarray(ref_m2).astype(np.int32))

    # ---- Test 3: matches-only fast path (no IoU writeback at all) ------------
    m3, no_ious = matcher_pallas(anchors2, gt2, emit_ious=False)
    jax.block_until_ready(m3)
    assert no_ious is None
    assert np.array_equal(np.asarray(m3), np.asarray(ref_m2).astype(np.int32))

    # TODO(synk): degenerate gt boxes (union == 0 -> NaN IoU) keep the running
    # argmax at 0 here, while numpy argmax would return the first NaN index.
    print("KERNEL_OK")
</pallas_src>

<mosaic_0001>
module attributes {stable_mosaic.version = 11 : i64} {
  func.func @kernel(%arg0: i32, %arg1: i32, %arg2: i32, %arg3: memref<3x128xf32, #tpu.memory_space<vmem>>, %arg4: memref<1x8x3xf32, #tpu.memory_space<vmem>>, %arg5: memref<1x8x128xf32, #tpu.memory_space<vmem>>, %arg6: memref<1x8x1xf32, #tpu.memory_space<vmem>>, %arg7: memref<1x8x1xi32, #tpu.memory_space<vmem>>) attributes {dimension_semantics = [#tpu.dimension_semantics<parallel>, #tpu.dimension_semantics<parallel>, #tpu.dimension_semantics<arbitrary>], iteration_bounds = array<i64: 1, 2, 1>, scalar_prefetch = 0 : i64, scratch_operands = 0 : i64, tpu.core_type = #tpu.core_type<tc>, window_params = [{transform_indices = @transform_0, window_bounds = array<i64: 3, 128>}, {transform_indices = @transform_1, window_bounds = array<i64: 1, 8, 3>}, {transform_indices = @transform_2, window_bounds = array<i64: 1, 8, 128>}, {transform_indices = @transform_3, window_bounds = array<i64: 1, 8, 1>}, {transform_indices = @transform_4, window_bounds = array<i64: 1, 8, 1>}]} {
    %c1_i32 = arith.constant 1 : i32
    %0 = arith.muli %arg0, %c1_i32 : i32
    %1 = arith.addi %0, %arg2 : i32
    %c0_i32 = arith.constant 0 : i32
    %2 = arith.cmpi eq, %arg2, %c0_i32 : i32
    %3 = arith.extui %2 : i1 to i32
    %c0_i32_0 = arith.constant 0 : i32
    %4 = arith.cmpi ne, %3, %c0_i32_0 : i32
    scf.if %4 {
      %cst_16 = arith.constant 0xFF800000 : f32
      %45 = vector.broadcast %cst_16 : f32 to vector<8x1xf32>
      %c0_17 = arith.constant 0 : index
      %c0_18 = arith.constant 0 : index
      %c0_19 = arith.constant 0 : index
      %46 = vector.load %arg6[%c0_17, %c0_18, %c0_19] : memref<1x8x1xf32, #tpu.memory_space<vmem>>, vector<1x8x1xf32>
      %47 = vector.shape_cast %46 : vector<1x8x1xf32> to vector<8x1xf32>
      %48 = vector.shape_cast %45 : vector<8x1xf32> to vector<1x8x1xf32>
      tpu.vector_store %arg6[%c0_17, %c0_18, %c0_19], %48 {strides = array<i32>} : memref<1x8x1xf32, #tpu.memory_space<vmem>>, vector<1x8x1xf32>,
      %c0_i32_20 = arith.constant 0 : i32
      %49 = vector.broadcast %c0_i32_20 : i32 to vector<8x1xi32>
      %c0_21 = arith.constant 0 : index
      %c0_22 = arith.constant 0 : index
      %c0_23 = arith.constant 0 : index
      %50 = vector.load %arg7[%c0_21, %c0_22, %c0_23] : memref<1x8x1xi32, #tpu.memory_space<vmem>>, vector<1x8x1xi32>
      %51 = vector.shape_cast %50 : vector<1x8x1xi32> to vector<8x1xi32>
      %52 = vector.shape_cast %49 : vector<8x1xi32> to vector<1x8x1xi32>
      tpu.vector_store %arg7[%c0_21, %c0_22, %c0_23], %52 {strides = array<i32>} : memref<1x8x1xi32, #tpu.memory_space<vmem>>, vector<1x8x1xi32>,
    } else {
    }
    %c0 = arith.constant 0 : index
    %c0_1 = arith.constant 0 : index
    %5 = vector.load %arg3[%c0, %c0_1] : memref<3x128xf32, #tpu.memory_space<vmem>>, vector<1x128xf32>
    %c1 = arith.constant 1 : index
    %c0_2 = arith.constant 0 : index
    %6 = vector.load %arg3[%c1, %c0_2] : memref<3x128xf32, #tpu.memory_space<vmem>>, vector<1x128xf32>
    %c2 = arith.constant 2 : index
    %c0_3 = arith.constant 0 : index
    %7 = vector.load %arg3[%c2, %c0_3] : memref<3x128xf32, #tpu.memory_space<vmem>>, vector<1x128xf32>
    %c0_4 = arith.constant 0 : index
    %c0_5 = arith.constant 0 : index
    %c0_6 = arith.constant 0 : index
    %8 = vector.load %arg4[%c0_4, %c0_5, %c0_6] : memref<1x8x3xf32, #tpu.memory_space<vmem>>, vector<1x8x3xf32>
    %9 = vector.shape_cast %8 : vector<1x8x3xf32> to vector<8x3xf32>
    %10 = vector.extract_strided_slice %9 {offsets = [0, 0], sizes = [8, 1], strides = [1, 1]} : vector<8x3xf32> to vector<8x1xf32>
    %11 = vector.extract_strided_slice %9 {offsets = [0, 1], sizes = [8, 1], strides = [1, 1]} : vector<8x3xf32> to vector<8x1xf32>
    %12 = vector.extract_strided_slice %9 {offsets = [0, 2], sizes = [8, 1], strides = [1, 1]} : vector<8x3xf32> to vector<8x1xf32>
    %13 = vector.broadcast %5 : vector<1x128xf32> to vector<8x128xf32>
    %14 = vector.broadcast %10 : vector<8x1xf32> to vector<8x128xf32>
    %15 = arith.minimumf %13, %14 : vector<8x128xf32>
    %cst = arith.constant 0.000000e+00 : f32
    %cst_7 = arith.constant 6.550400e+04 : f32
    %16 = vector.broadcast %cst : f32 to vector<8x128xf32>
    %17 = arith.maximumf %16, %15 : vector<8x128xf32>
    %18 = vector.broadcast %cst_7 : f32 to vector<8x128xf32>
    %19 = arith.minimumf %18, %17 : vector<8x128xf32>
    %20 = vector.broadcast %6 : vector<1x128xf32> to vector<8x128xf32>
    %21 = vector.broadcast %11 : vector<8x1xf32> to vector<8x128xf32>
    %22 = arith.minimumf %20, %21 : vector<8x128xf32>
    %cst_8 = arith.constant 0.000000e+00 : f32
    %cst_9 = arith.constant 6.550400e+04 : f32
    %23 = vector.broadcast %cst_8 : f32 to vector<8x128xf32>
    %24 = arith.maximumf %23, %22 : vector<8x128xf32>
    %25 = vector.broadcast %cst_9 : f32 to vector<8x128xf32>
    %26 = arith.minimumf %25, %24 : vector<8x128xf32>
    %27 = arith.mulf %19, %26 : vector<8x128xf32>
    %28 = vector.broadcast %7 : vector<1x128xf32> to vector<8x128xf32>
    %29 = vector.broadcast %12 : vector<8x1xf32> to vector<8x128xf32>
    %30 = arith.addf %28, %29 : vector<8x128xf32>
    %31 = arith.subf %30, %27 : vector<8x128xf32>
    %32 = tpu.reciprocal %31 : vector<8x128xf32> -> vector<8x128xf32>
    %33 = arith.mulf %27, %32 : vector<8x128xf32>
    %c0_10 = arith.constant 0 : index
    %c0_11 = arith.constant 0 : index
    %c0_12 = arith.constant 0 : index
    %34 = vector.load %arg5[%c0_10, %c0_11, %c0_12] : memref<1x8x128xf32, #tpu.memory_space<vmem>>, vector<1x8x128xf32>
    %35 = vector.shape_cast %34 : vector<1x8x128xf32> to vector<8x128xf32>
    %36 = vector.shape_cast %33 : vector<8x128xf32> to vector<1x8x128xf32>
    tpu.vector_store %arg5[%c0_10, %c0_11, %c0_12], %36 {strides = array<i32>} : memref<1x8x128xf32, #tpu.memory_space<vmem>>, vector<1x8x128xf32>,
    %c1_i32_13 = arith.constant 1 : i32
    %37 = arith.addi %1, %c1_i32_13 : i32
    %c128_i32 = arith.constant 128 : i32
    %38 = arith.muli %37, %c128_i32 : i32
    %c9_i32 = arith.constant 9 : i32
    %39 = arith.cmpi sgt, %38, %c9_i32 : i32
    %40 = arith.extui %39 : i1 to i32
    %c0_i32_14 = arith.constant 0 : i32
    %41 = arith.cmpi ne, %40, %c0_i32_14 : i32
    scf.if %41 {
      %45 = tpu.iota {dimensions = array<i32: 1>} : vector<8x128xi32>
      %c128_i32_16 = arith.constant 128 : i32
      %46 = arith.muli %1, %c128_i32_16 : i32
      %47 = vector.broadcast %46 : i32 to vector<8x128xi32>
      %48 = arith.addi %47, %45 : vector<8x128xi32>
      %c9_i32_17 = arith.constant 9 : i32
      %49 = vector.broadcast %c9_i32_17 : i32 to vector<8x128xi32>
      %50 = arith.cmpi slt, %48, %49 : vector<8x128xi32>
      %cst_18 = arith.constant 0xFF800000 : f32
      %51 = vector.broadcast %cst_18 : f32 to vector<8x128xf32>
      %52 = arith.select %50, %33, %51 : vector<8x128xi1>, vector<8x128xf32>
      %53 = tpu.iota {dimensions = array<i32: 1>} : vector<8x128xi32>
      %cst_19 = arith.constant dense<0xFF800000> : vector<8xf32>
      %54 = vector.multi_reduction <maximumf>, %52, %cst_19 [1] : vector<8x128xf32> to vector<8xf32>
      %55 = vector.shape_cast %54 : vector<8xf32> to vector<8x1xf32>
      %56 = vector.broadcast %55 : vector<8x1xf32> to vector<8x128xf32>
      %57 = arith.cmpf oeq, %52, %56 : vector<8x128xf32>
      %c128_i32_20 = arith.constant 128 : i32
      %58 = vector.broadcast %c128_i32_20 : i32 to vector<8x128xi32>
      %59 = arith.select %57, %53, %58 : vector<8x128xi1>, vector<8x128xi32>
      %cst_21 = arith.constant dense<2147483647> : vector<8xi32>
      %60 = vector.multi_reduction <minsi>, %59, %cst_21 [1] : vector<8x128xi32> to vector<8xi32>
      %61 = vector.shape_cast %60 : vector<8xi32> to vector<8x1xi32>
      %c128_i32_22 = arith.constant 128 : i32
      %62 = arith.muli %1, %c128_i32_22 : i32
      %63 = vector.broadcast %62 : i32 to vector<8x1xi32>
      %64 = arith.addi %61, %63 : vector<8x1xi32>
      %c0_23 = arith.constant 0 : index
      %c0_24 = arith.constant 0 : index
      %c0_25 = arith.constant 0 : index
      %65 = vector.load %arg6[%c0_23, %c0_24, %c0_25] : memref<1x8x1xf32, #tpu.memory_space<vmem>>, vector<1x8x1xf32>
      %66 = vector.shape_cast %65 : vector<1x8x1xf32> to vector<8x1xf32>
      %67 = arith.cmpf ogt, %55, %66 : vector<8x1xf32>
      %c0_26 = arith.constant 0 : index
      %c0_27 = arith.constant 0 : index
      %c0_28 = arith.constant 0 : index
      %68 = vector.load %arg7[%c0_26, %c0_27, %c0_28] : memref<1x8x1xi32, #tpu.memory_space<vmem>>, vector<1x8x1xi32>
      %69 = vector.shape_cast %68 : vector<1x8x1xi32> to vector<8x1xi32>
      %70 = arith.select %67, %64, %69 : vector<8x1xi1>, vector<8x1xi32>
      %c0_29 = arith.constant 0 : index
      %c0_30 = arith.constant 0 : index
      %c0_31 = arith.constant 0 : index
      %71 = vector.load %arg7[%c0_29, %c0_30, %c0_31] : memref<1x8x1xi32, #tpu.memory_space<vmem>>, vector<1x8x1xi32>
      %72 = vector.shape_cast %71 : vector<1x8x1xi32> to vector<8x1xi32>
      %73 = vector.shape_cast %70 : vector<8x1xi32> to vector<1x8x1xi32>
      tpu.vector_store %arg7[%c0_29, %c0_30, %c0_31], %73 {strides = array<i32>} : memref<1x8x1xi32, #tpu.memory_space<vmem>>, vector<1x8x1xi32>,
      %74 = arith.select %67, %55, %66 : vector<8x1xi1>, vector<8x1xf32>
      %c0_32 = arith.constant 0 : index
      %c0_33 = arith.constant 0 : index
      %c0_34 = arith.constant 0 : index
      %75 = vector.load %arg6[%c0_32, %c0_33, %c0_34] : memref<1x8x1xf32, #tpu.memory_space<vmem>>, vector<1x8x1xf32>
      %76 = vector.shape_cast %75 : vector<1x8x1xf32> to vector<8x1xf32>
      %77 = vector.shape_cast %74 : vector<8x1xf32> to vector<1x8x1xf32>
      tpu.vector_store %arg6[%c0_32, %c0_33, %c0_34], %77 {strides = array<i32>} : memref<1x8x1xf32, #tpu.memory_space<vmem>>, vector<1x8x1xf32>,
    } else {
    }
    %true = arith.constant true
    %42 = arith.xori %39, %true : i1
    %43 = arith.extui %42 : i1 to i32
    %c0_i32_15 = arith.constant 0 : i32
    %44 = arith.cmpi ne, %43, %c0_i32_15 : i32
    scf.if %44 {
      %45 = tpu.iota {dimensions = array<i32: 1>} : vector<8x128xi32>
      %cst_16 = arith.constant dense<0xFF800000> : vector<8xf32>
      %46 = vector.multi_reduction <maximumf>, %33, %cst_16 [1] : vector<8x128xf32> to vector<8xf32>
      %47 = vector.shape_cast %46 : vector<8xf32> to vector<8x1xf32>
      %48 = vector.broadcast %47 : vector<8x1xf32> to vector<8x128xf32>
      %49 = arith.cmpf oeq, %33, %48 : vector<8x128xf32>
      %c128_i32_17 = arith.constant 128 : i32
      %50 = vector.broadcast %c128_i32_17 : i32 to vector<8x128xi32>
      %51 = arith.select %49, %45, %50 : vector<8x128xi1>, vector<8x128xi32>
      %cst_18 = arith.constant dense<2147483647> : vector<8xi32>
      %52 = vector.multi_reduction <minsi>, %51, %cst_18 [1] : vector<8x128xi32> to vector<8xi32>
      %53 = vector.shape_cast %52 : vector<8xi32> to vector<8x1xi32>
      %c128_i32_19 = arith.constant 128 : i32
      %54 = arith.muli %1, %c128_i32_19 : i32
      %55 = vector.broadcast %54 : i32 to vector<8x1xi32>
      %56 = arith.addi %53, %55 : vector<8x1xi32>
      %c0_20 = arith.constant 0 : index
      %c0_21 = arith.constant 0 : index
      %c0_22 = arith.constant 0 : index
      %57 = vector.load %arg6[%c0_20, %c0_21, %c0_22] : memref<1x8x1xf32, #tpu.memory_space<vmem>>, vector<1x8x1xf32>
      %58 = vector.shape_cast %57 : vector<1x8x1xf32> to vector<8x1xf32>
      %59 = arith.cmpf ogt, %47, %58 : vector<8x1xf32>
      %c0_23 = arith.constant 0 : index
      %c0_24 = arith.constant 0 : index
      %c0_25 = arith.constant 0 : index
      %60 = vector.load %arg7[%c0_23, %c0_24, %c0_25] : memref<1x8x1xi32, #tpu.memory_space<vmem>>, vector<1x8x1xi32>
      %61 = vector.shape_cast %60 : vector<1x8x1xi32> to vector<8x1xi32>
      %62 = arith.select %59, %56, %61 : vector<8x1xi1>, vector<8x1xi32>
      %c0_26 = arith.constant 0 : index
      %c0_27 = arith.constant 0 : index
      %c0_28 = arith.constant 0 : index
      %63 = vector.load %arg7[%c0_26, %c0_27, %c0_28] : memref<1x8x1xi32, #tpu.memory_space<vmem>>, vector<1x8x1xi32>
      %64 = vector.shape_cast %63 : vector<1x8x1xi32> to vector<8x1xi32>
      %65 = vector.shape_cast %62 : vector<8x1xi32> to vector<1x8x1xi32>
      tpu.vector_store %arg7[%c0_26, %c0_27, %c0_28], %65 {strides = array<i32>} : memref<1x8x1xi32, #tpu.memory_space<vmem>>, vector<1x8x1xi32>,
      %66 = arith.select %59, %47, %58 : vector<8x1xi1>, vector<8x1xf32>
      %c0_29 = arith.constant 0 : index
      %c0_30 = arith.constant 0 : index
      %c0_31 = arith.constant 0 : index
      %67 = vector.load %arg6[%c0_29, %c0_30, %c0_31] : memref<1x8x1xf32, #tpu.memory_space<vmem>>, vector<1x8x1xf32>
      %68 = vector.shape_cast %67 : vector<1x8x1xf32> to vector<8x1xf32>
      %69 = vector.shape_cast %66 : vector<8x1xf32> to vector<1x8x1xf32>
      tpu.vector_store %arg6[%c0_29, %c0_30, %c0_31], %69 {strides = array<i32>} : memref<1x8x1xf32, #tpu.memory_space<vmem>>, vector<1x8x1xf32>,
    } else {
    }
    return
  }
  func.func @transform_0(%arg0: i32, %arg1: i32, %arg2: i32) -> (i32, i32) {
    %c1_i32 = arith.constant 1 : i32
    %0 = arith.muli %arg0, %c1_i32 : i32
    %1 = arith.addi %0, %arg2 : i32
    %c0_i32 = arith.constant 0 : i32
    %c0_i32_0 = arith.constant 0 : i32
    return %c0_i32, %1 : i32, i32
  }
  func.func @transform_1(%arg0: i32, %arg1: i32, %arg2: i32) -> (i32, i32, i32) {
    %c0_i32 = arith.constant 0 : i32
    %c0_i32_0 = arith.constant 0 : i32
    %c0_i32_1 = arith.constant 0 : i32
    return %arg1, %c0_i32, %c0_i32_0 : i32, i32, i32
  }
  func.func @transform_2(%arg0: i32, %arg1: i32, %arg2: i32) -> (i32, i32, i32) {
    %c1_i32 = arith.constant 1 : i32
    %0 = arith.muli %arg0, %c1_i32 : i32
    %1 = arith.addi %0, %arg2 : i32
    %c0_i32 = arith.constant 0 : i32
    %c0_i32_0 = arith.constant 0 : i32
    return %arg1, %c0_i32, %1 : i32, i32, i32
  }
  func.func @transform_3(%arg0: i32, %arg1: i32, %arg2: i32) -> (i32, i32, i32) {
    %c2_i32 = arith.constant 2 : i32
    %0 = arith.muli %arg0, %c2_i32 : i32
    %1 = arith.addi %0, %arg1 : i32
    %c0_i32 = arith.constant 0 : i32
    %c0_i32_0 = arith.constant 0 : i32
    %c0_i32_1 = arith.constant 0 : i32
    return %1, %c0_i32, %c0_i32_0 : i32, i32, i32
  }
  func.func @transform_4(%arg0: i32, %arg1: i32, %arg2: i32) -> (i32, i32, i32) {
    %c2_i32 = arith.constant 2 : i32
    %0 = arith.muli %arg0, %c2_i32 : i32
    %1 = arith.addi %0, %arg1 : i32
    %c0_i32 = arith.constant 0 : i32
    %c0_i32_0 = arith.constant 0 : i32
    %c0_i32_1 = arith.constant 0 : i32
    return %1, %c0_i32, %c0_i32_0 : i32, i32, i32
  }
}

</mosaic_0001>

<llo_original>
// kernel: tpu_custom_call.1
$region0: #{tpu_custom_call.1}
  #allocation0 [shape = 'u32[]', space=smem, size = 0x4, offset = 0x4, fixed_abs, tag = 'smem constant byte address 0x4 - core index']
  #allocation1 [shape = 'u32[144,128]{1,0:T(1,128)}', space=vmem, size = 0x12000, scoped, tag = 'internal scratch']
  %s0 = inlined_call_operand.vmem [shape: f32[3,128], index: 0, kind: input, shape index: {}]
  %s1 = inlined_call_operand.vmem [shape: f32[2,8,3], index: 1, kind: input, shape index: {}]
  %s2 = inlined_call_operand.hbm [shape: f32[2,8,128], index: 2, kind: output, shape index: {0}]
  %s3 = inlined_call_operand.vmem [shape: f32[2,8,1], index: 3, kind: output, shape index: {1}]
  %s4 = inlined_call_operand.vmem [shape: s32[2,8,1], index: 4, kind: output, shape index: {2}]
  %5 = xla_tuple %s2, %s3, %s4
  %s6 = sld [smem:[#allocation0]]
  $region69: #{tpu_custom_call.1} parent=0
    _
  %s8 = ssub.s32 1, %s6
  %s9 = scalar_select 0, %s8, %s6
  $region1: #{tpu_custom_call.1} parent=0
    #allocation2 [shape = 'u8[8192]{0}', space=vmem, size = 0x2000, scoped, tag = 'output window, operand 0']
    #allocation3 [shape = 's32[2]{0}', space=sflag, size = 0x8, scoped, tag = 'scoped memory for tpu_custom_call.1']
    %10 = vsyncpa [#allocation3], 0
    %s11 = scalar_lea.sflag [#allocation3], 1
    %12 = vsyncpa %s11, 0
    loop: start=0, step=1, limit=4
    $region2: #{tpu_custom_call.1} parent=1 // loop_pre_header
      _
    $region3: #{tpu_custom_call.1} parent=1 // loop_header
      %s14 = sphi 0, %s18
      %p15 = scmp.ge.s32.totalorder %s14, 4
      %s21 = sphi 0, %s40
      %s22 = sphi 0, %s36
      %s23 = sphi 0, %s32
      %s24 = sphi 0, %s21
      %s25 = sphi 0, %s22
      %s26 = sphi 0, %s23
      %s27 = sphi 0, %s24
      %s28 = sphi 0, %s25
      %s29 = sphi 0, %s26
      %s45 = sphi 0, %s47
      %s48 = sphi 0, %s45
      %s49 = sphi 0, %s48
      %s65 = sphi 0, %s49
      %s71 = sphi 0, %s73
      %s74 = sphi 0, %s71
      %s75 = sphi 0, %s74
      %s91 = sphi 0, %s75
      %s101 = sphi 0, %s103
      %s104 = sphi 0, %s101
      %s105 = sphi 0, %s104
      %s121 = sphi 0, %s105
      %s131 = sphi 0, %s133
      %s134 = sphi 0, %s131
      %s135 = sphi 0, %s134
      %s151 = sphi 0, %s135
      %s161 = sphi 0, %s163
      %s164 = sphi 0, %s161
      %s165 = sphi 0, %s164
      %s181 = sphi 0, %s165
    $region4: #{tpu_custom_call.1} parent=1 // loop_header_branch
      %17 = sbr.rel (%p15) target = $region8
    $region5: #{tpu_custom_call.1} parent=1 // loop_body
      %s19 = ssub.s32 %s14, 1
      %s20 = ssub.s32 %s14, 2
      %s30 = sadd.s32 1, %s23
      %p31 = scmp.ge.s32.totalorder %s30, 1
      %s32 = scalar_select %p31, 0, %s30
      %s33 = sadd.s32 1, %s22
      %s34 = scalar_select %p31, %s33, %s22
      %p35 = scmp.ge.s32.totalorder %s34, 2
      %s36 = scalar_select %p35, 0, %s34
      %s37 = sadd.s32 1, %s21
      %s38 = scalar_select %p35, %s37, %s21
      %p39 = scmp.ge.s32.totalorder %s38, 1
      %s40 = scalar_select %p39, 0, %s38
      %s41 = sadd.s32 %s21, %s23
      %s42 = sadd.s32 %s40, %s32
      %s43 = ssub.s32 %s41, %s42
      %p44 = scmp.eq.s32.totalorder %s43, 0
      %s46 = sadd.s32 %s45, 1
      %s47 = scalar_select %p44, %s45, %s46
      %p50 = pneg %p44
      %p51 = scmp.eq.s32.totalorder %s14, 1
      %p52 = por %p50, %p51
      %p53 = scmp.ne.s32.totalorder %s45, %s48
      %p54 = scmp.eq.s32.totalorder %s14, 0
      %p55 = por %p53, %p54
      %p56 = scmp.ne.s32.totalorder %s45, %s48
      %p57 = scmp.eq.s32.totalorder %s19, 1
      %p58 = por %p56, %p57
      %p59 = scmp.ne.s32.totalorder %s48, %s49
      %p60 = scmp.eq.s32.totalorder %s19, 0
      %p61 = por %p59, %p60
      %p62 = scmp.ne.s32.totalorder %s48, %s49
      %p63 = scmp.eq.s32.totalorder %s20, 1
      %p64 = por %p62, %p63
      %p66 = scmp.ne.s32.totalorder %s49, %s65
      %p67 = scmp.eq.s32.totalorder %s20, 0
      %p68 = por %p66, %p67
      %s69 = ssub.s32 %s22, %s36
      %p70 = scmp.eq.s32.totalorder %s69, 0
      %s72 = sadd.s32 %s71, 1
      %s73 = scalar_select %p70, %s71, %s72
      %p76 = pneg %p70
      %p77 = scmp.eq.s32.totalorder %s14, 1
      %p78 = por %p76, %p77
      %p79 = scmp.ne.s32.totalorder %s71, %s74
      %p80 = scmp.eq.s32.totalorder %s14, 0
      %p81 = por %p79, %p80
      %p82 = scmp.ne.s32.totalorder %s71, %s74
      %p83 = scmp.eq.s32.totalorder %s19, 1
      %p84 = por %p82, %p83
      %p85 = scmp.ne.s32.totalorder %s74, %s75
      %p86 = scmp.eq.s32.totalorder %s19, 0
      %p87 = por %p85, %p86
      %p88 = scmp.ne.s32.totalorder %s74, %s75
      %p89 = scmp.eq.s32.totalorder %s20, 1
      %p90 = por %p88, %p89
      %p92 = scmp.ne.s32.totalorder %s75, %s91
      %p93 = scmp.eq.s32.totalorder %s20, 0
      %p94 = por %p92, %p93
      %s95 = sadd.s32 %s21, %s23
      %s96 = sadd.s32 %s40, %s32
      %s97 = ssub.s32 %s22, %s36
      %s98 = ssub.s32 %s95, %s96
      %s99 = sor.u32 %s97, %s98
      %p100 = scmp.eq.s32.totalorder %s99, 0
      %s102 = sadd.s32 %s101, 1
      %s103 = scalar_select %p100, %s101, %s102
      %p106 = pneg %p100
      %p107 = scmp.eq.s32.totalorder %s14, 1
      %p108 = por %p106, %p107
      %p109 = scmp.ne.s32.totalorder %s101, %s104
      %p110 = scmp.eq.s32.totalorder %s14, 0
      %p111 = por %p109, %p110
      %p112 = scmp.ne.s32.totalorder %s101, %s104
      %p113 = scmp.eq.s32.totalorder %s19, 1
      %p114 = por %p112, %p113
      %p115 = scmp.ne.s32.totalorder %s104, %s105
      %p116 = scmp.eq.s32.totalorder %s19, 0
      %p117 = por %p115, %p116
      %p118 = scmp.ne.s32.totalorder %s104, %s105
      %p119 = scmp.eq.s32.totalorder %s20, 1
      %p120 = por %p118, %p119
      %p122 = scmp.ne.s32.totalorder %s105, %s121
      %p123 = scmp.eq.s32.totalorder %s20, 0
      %p124 = por %p122, %p123
      %s125 = smul.u32 %s21, 2
      %s126 = sadd.s32 %s125, %s22
      %s127 = smul.u32 %s40, 2
      %s128 = sadd.s32 %s127, %s36
      %s129 = ssub.s32 %s126, %s128
      %p130 = scmp.eq.s32.totalorder %s129, 0
      %s132 = sadd.s32 %s131, 1
      %s133 = scalar_select %p130, %s131, %s132
      %p136 = pneg %p130
      %p137 = scmp.eq.s32.totalorder %s14, 1
      %p138 = por %p136, %p137
      %p139 = scmp.ne.s32.totalorder %s131, %s134
      %p140 = scmp.eq.s32.totalorder %s14, 0
      %p141 = por %p139, %p140
      %p142 = scmp.ne.s32.totalorder %s131, %s134
      %p143 = scmp.eq.s32.totalorder %s19, 1
      %p144 = por %p142, %p143
      %p145 = scmp.ne.s32.totalorder %s134, %s135
      %p146 = scmp.eq.s32.totalorder %s19, 0
      %p147 = por %p145, %p146
      %p148 = scmp.ne.s32.totalorder %s134, %s135
      %p149 = scmp.eq.s32.totalorder %s20, 1
      %p150 = por %p148, %p149
      %p152 = scmp.ne.s32.totalorder %s135, %s151
      %p153 = scmp.eq.s32.totalorder %s20, 0
      %p154 = por %p152, %p153
      %s155 = smul.u32 %s21, 2
      %s156 = sadd.s32 %s155, %s22
      %s157 = smul.u32 %s40, 2
      %s158 = sadd.s32 %s157, %s36
      %s159 = ssub.s32 %s156, %s158
      %p160 = scmp.eq.s32.totalorder %s159, 0
      %s162 = sadd.s32 %s161, 1
      %s163 = scalar_select %p160, %s161, %s162
      %p166 = pneg %p160
      %p167 = scmp.eq.s32.totalorder %s14, 1
      %p168 = por %p166, %p167
      %p169 = scmp.ne.s32.totalorder %s161, %s164
      %p170 = scmp.eq.s32.totalorder %s14, 0
      %p171 = por %p169, %p170
      %p172 = scmp.ne.s32.totalorder %s161, %s164
      %p173 = scmp.eq.s32.totalorder %s19, 1
      %p174 = por %p172, %p173
      %p175 = scmp.ne.s32.totalorder %s164, %s165
      %p176 = scmp.eq.s32.totalorder %s19, 0
      %p177 = por %p175, %p176
      %p178 = scmp.ne.s32.totalorder %s164, %s165
      %p179 = scmp.eq.s32.totalorder %s20, 1
      %p180 = por %p178, %p179
      %p182 = scmp.ne.s32.totalorder %s165, %s181
      %p183 = scmp.eq.s32.totalorder %s20, 0
      %p184 = por %p182, %p183
      %p185 = scmp.le.s32.totalorder 1, %s14
      %p186 = scmp.lt.s32.totalorder %s14, 3
      %p187 = pnand %p185, %p186
      %p188 = pneg %p187
      // Predicated region
      $region9: #{tpu_custom_call.1} parent=5 // pred_check
        _
      $region10: #{tpu_custom_call.1} parent=5 // pred_check_branch
        %190 = sbr.rel (%p187) target = $region12
      $region11: #{tpu_custom_call.1} parent=5 // pred_region
        %s191 = ssub.s32 %s14, 1
        // Predicated region
        $region13: #{tpu_custom_call.1} parent=11 // pred_check
          %p192 = pneg %p61
        $region14: #{tpu_custom_call.1} parent=11 // pred_check_branch
          %194 = sbr.rel (%p192) target = $region16
        $region15: #{tpu_custom_call.1} parent=11 // pred_region
          %s195 = sadd.s32 %s24, %s26
          %p196 = scmp.lt.s32.totalorder %s195, 0
          %s197 = scalar_select %p196, %s195, 0
          %s198 = smul.addr %s197, 4
          %s199 = scalar_lea.vmem %s0, %s198
          %s200 = sadd.s32 %s24, %s26
        $region16: #{tpu_custom_call.1} parent=11 // pred_fallthru
          _
      $region12: #{tpu_custom_call.1} parent=5 // pred_fallthru
        _
      %p201 = scmp.lt.s32.totalorder %s14, 2
      // Predicated region
      $region17: #{tpu_custom_call.1} parent=5 // pred_check
        %p202 = pneg %p201
      $region18: #{tpu_custom_call.1} parent=5 // pred_check_branch
        %204 = sbr.rel (%p202) target = $region20
      $region19: #{tpu_custom_call.1} parent=5 // pred_region
        // Predicated region
        $region21: #{tpu_custom_call.1} parent=19 // pred_check
          %p205 = pneg %p81
        $region22: #{tpu_custom_call.1} parent=19 // pred_check_branch
          %207 = sbr.rel (%p205) target = $region24
        $region23: #{tpu_custom_call.1} parent=19 // pred_region
          %p208 = scmp.lt.s32.totalorder %s22, 1
          %s209 = scalar_select %p208, %s22, 1
          %s210 = smul.addr %s209, 8
          %s211 = scalar_lea.vmem %s1, %s210
        $region24: #{tpu_custom_call.1} parent=19 // pred_fallthru
          _
      $region20: #{tpu_custom_call.1} parent=5 // pred_fallthru
        _
      %p212 = scmp.le.s32.totalorder 1, %s14
      %p213 = scmp.lt.s32.totalorder %s14, 3
      %p214 = pnand %p212, %p213
      %p215 = pneg %p214
      // Predicated region
      $region25: #{tpu_custom_call.1} parent=5 // pred_check
        _
      $region26: #{tpu_custom_call.1} parent=5 // pred_check_branch
        %217 = sbr.rel (%p214) target = $region28
      $region27: #{tpu_custom_call.1} parent=5 // pred_region
        %s218 = ssub.s32 %s14, 1
        %s219 = sadd.s32 %s24, %s26
        %p220 = scmp.lt.s32.totalorder %s219, 0
        %s221 = scalar_select %p220, %s219, 0
        %s222 = smul.addr %s221, 4
        %s223 = scalar_lea.vmem %s0, %s222
        %p224 = pneg %p61
        %p225 = pneg %p58
        %p226 = scmp.lt.s32.totalorder %s25, 1
        %s227 = scalar_select %p226, %s25, 1
        %s228 = smul.addr %s227, 8
        %s229 = scalar_lea.vmem %s1, %s228
        %p230 = pneg %p87
        %p231 = pneg %p84
        %p232 = pneg %p117
        %p233 = pneg %p114
        %s234 = sand.u32 %s104, 1
        %s235 = scalar_lea.sflag [#allocation3], %s234
        %s236 = sand.u32 %s104, 1
        %s237 = smul.addr %s236, 8
        %s238 = scalar_lea.vmem [#allocation2], %s237
        %p239 = pneg %p147
        %p240 = pneg %p144
        %s241 = smul.u32 %s24, 2
        %s242 = sadd.s32 %s241, %s25
        %p243 = scmp.lt.s32.totalorder %s242, 1
        %s244 = scalar_select %p243, %s242, 1
        %s245 = smul.addr %s244, 8
        %s246 = scalar_lea.vmem %s3, %s245
        %p247 = pneg %p177
        %p248 = pneg %p174
        %s249 = smul.u32 %s24, 2
        %s250 = sadd.s32 %s249, %s25
        %p251 = scmp.lt.s32.totalorder %s250, 1
        %s252 = scalar_select %p251, %s250, 1
        %s253 = smul.addr %s252, 8
        %s254 = scalar_lea.vmem %s4, %s253
        %s255 = sadd.s32 %s24, %s26
        %p256 = scmp.lt.s32.totalorder %s255, 0
        %s257 = scalar_select %p256, %s255, 0
        %s258 = smul.addr %s257, 4
        %s259 = scalar_lea.vmem %s0, %s258
        %s260 = sadd.s32 %s24, %s26
        %p261 = scmp.lt.s32.totalorder %s25, 1
        %s262 = scalar_select %p261, %s25, 1
        %s263 = smul.addr %s262, 8
        %s264 = scalar_lea.vmem %s1, %s263
        %s265 = sadd.s32 %s24, %s26
        %s266 = smul.u32 %s24, 2
        %s267 = sadd.s32 %s266, %s25
        %p268 = scmp.lt.s32.totalorder %s267, 1
        %s269 = scalar_select %p268, %s267, 1
        %s270 = smul.addr %s269, 8
        %s271 = scalar_lea.vmem %s3, %s270
        %s272 = smul.u32 %s24, 2
        %s273 = sadd.s32 %s272, %s25
        %s274 = smul.u32 %s24, 2
        %s275 = sadd.s32 %s274, %s25
        %p276 = scmp.lt.s32.totalorder %s275, 1
        %s277 = scalar_select %p276, %s275, 1
        %s278 = smul.addr %s277, 8
        %s279 = scalar_lea.vmem %s4, %s278
        %s280 = smul.u32 %s24, 2
        %s281 = sadd.s32 %s280, %s25
        %s282 = sadd.s32 %s24, %s26
        %p283 = scmp.eq.s32.totalorder %s26, 0
        // Predicated region
        $region29: #{tpu_custom_call.1} parent=27 // pred_check
          %p284 = pneg %p283
        $region30: #{tpu_custom_call.1} parent=27 // pred_check_branch
          %286 = sbr.rel (%p284) target = $region32
        $region31: #{tpu_custom_call.1} parent=27 // pred_region
          %vm287 = vcmask 7168
          %288 = vst.msk [vmem:[%s271] sm:$0xff] %vm287, -inf
          %289 = vst.msk [vmem:[%s279] sm:$0xff] %vm287, 0
        $region32: #{tpu_custom_call.1} parent=27 // pred_fallthru
          _
        %v290 = vld [vmem:[%s259] sm:$0x1]
        %v291 = vld [vmem:[%s259 + $0x1] sm:$0x1]
        %v292 = vld [vmem:[%s259 + $0x2] sm:$0x1]
        %v293 = vld [vmem:[%s264] sm:$0xff]
        %v294 = vlaneseq
        %v295 = vshrl.u32 %v294, 7
        %v296 = vsub.s32 0, %v295
        %v297 = vrot.slane %v290, %v296
        %299 = vset.pattern.permute.xlu0 0
        %300 = vperm.xlu0 %299, %v293
        %v301 = vpop.permute.xlu0 %300
        %v303 = vmin.f32 %v297, %v301
        %v304 = vmax.f32 %v303, 0.0
        %v305 = vmin.f32 %v304, 65504.0
        %v306 = vlaneseq
        %v307 = vshrl.u32 %v306, 7
        %v308 = vsub.s32 0, %v307
        %v309 = vrot.slane %v291, %v308
        %310 = vset.pattern.permute.xlu0 1
        %311 = vperm.xlu0 %310, %v293
        %v312 = vpop.permute.xlu0 %311
        %v314 = vmin.f32 %v309, %v312
        %v315 = vmax.f32 %v314, 0.0
        %v316 = vmin.f32 %v315, 65504.0
        %v317 = vmul.f32 %v305, %v316
        %v318 = vlaneseq
        %v319 = vshrl.u32 %v318, 7
        %v320 = vsub.s32 0, %v319
        %v321 = vrot.slane %v292, %v320
        %322 = vset.pattern.permute.xlu0 2
        %323 = vperm.xlu0 %322, %v293
        %v324 = vpop.permute.xlu0 %323
        %v326 = vadd.f32 %v321, %v324
        %v327 = vsub.f32 %v326, %v317
        %v328 = vrcp.pop %v327
        %v329 = vmul.f32 %v317, %v328
        %330 = vst [vmem:[%s238] sm:$0xff] %v329
        %s331 = sadd.s32 %s282, 1
        %s332 = smul.u32 %s331, 128
        %p333 = scmp.gt.s32.totalorder %s332, 9
        // Predicated region
        $region33: #{tpu_custom_call.1} parent=27 // pred_check
          %p334 = pneg %p333
        $region34: #{tpu_custom_call.1} parent=27 // pred_check_branch
          %336 = sbr.rel (%p334) target = $region36
        $region35: #{tpu_custom_call.1} parent=27 // pred_region
          %v337 = vlaneseq
          %v338 = vand.u32 %v337, 127
          %s339 = smul.u32 %s282, 128
          %v340 = vstv %s339
          %v341 = vadd.s32 %v340, %v338
          %vm342 = vcmp.lt.s32.totalorder %v341, 9
          %v343 = vsel %vm342, %v329, -inf
          %344 = vmax.xlane.f32.xlu0 %v343
          %v345 = vpop.xlane.xlu0 %344
          %vm346 = vcmp.eq.f32.partialorder %v343, %v345
          %v347 = vsel %vm346, %v338, 128
          %v348 = vand.u32 %v347, 65535
          %v349 = vshra.s32 %v347, 16
          %v350 = vcvt.s32.f32 %v348
          %v351 = vcvt.s32.f32 %v349
          %352 = vmin.xlane.f32.xlu0 %v351
          %v353 = vpop.xlane.xlu0 %352
          %vm354 = vcmp.eq.f32.partialorder %v351, %v353
          %v355 = vsel %vm354, %v350, inf
          %356 = vmin.xlane.f32.xlu0 %v355
          %v357 = vpop.xlane.xlu0 %356
          %v358 = vcvt.f32.s32 %v357
          %v359 = vcvt.f32.s32 %v353
          %v360 = vshll.u32 %v359, 16
          %v361 = vadd.s32 %v360, %v358
          %v362 = vadd.s32 %v361, %v340
          %v363 = vld [vmem:[%s271] sm:$0xff]
          %vm364 = vcmp.gt.f32.partialorder %v345, %v363
          %v365 = vld [vmem:[%s279] sm:$0xff]
          %v366 = vsel %vm364, %v362, %v365
          %vm367 = vcmask 7168
          %368 = vst.msk [vmem:[%s279] sm:$0xff] %vm367, %v366
          %v369 = vsel %vm364, %v345, %v363
          %370 = vst.msk [vmem:[%s271] sm:$0xff] %vm367, %v369
        $region36: #{tpu_custom_call.1} parent=27 // pred_fallthru
          _
        %p371 = scmp.le.s32.totalorder %s332, 9
        // Predicated region
        $region37: #{tpu_custom_call.1} parent=27 // pred_check
          %p372 = pneg %p371
        $region38: #{tpu_custom_call.1} parent=27 // pred_check_branch
          %374 = sbr.rel (%p372) target = $region40
        $region39: #{tpu_custom_call.1} parent=27 // pred_region
          %v375 = vlaneseq
          %v376 = vand.u32 %v375, 127
          %377 = vmax.xlane.f32.xlu0 %v329
          %v378 = vpop.xlane.xlu0 %377
          %vm379 = vcmp.eq.f32.partialorder %v329, %v378
          %v380 = vsel %vm379, %v376, 128
          %v381 = vand.u32 %v380, 65535
          %v382 = vshra.s32 %v380, 16
          %v383 = vcvt.s32.f32 %v381
          %v384 = vcvt.s32.f32 %v382
          %385 = vmin.xlane.f32.xlu0 %v384
          %v386 = vpop.xlane.xlu0 %385
          %vm387 = vcmp.eq.f32.partialorder %v384, %v386
          %v388 = vsel %vm387, %v383, inf
          %389 = vmin.xlane.f32.xlu0 %v388
          %v390 = vpop.xlane.xlu0 %389
          %v391 = vcvt.f32.s32 %v390
          %v392 = vcvt.f32.s32 %v386
          %v393 = vshll.u32 %v392, 16
          %v394 = vadd.s32 %v393, %v391
          %s395 = smul.u32 %s282, 128
          %v396 = vstv %s395
          %v397 = vadd.s32 %v394, %v396
          %v398 = vld [vmem:[%s271] sm:$0xff]
          %vm399 = vcmp.gt.f32.partialorder %v378, %v398
          %v400 = vld [vmem:[%s279] sm:$0xff]
          %v401 = vsel %vm399, %v397, %v400
          %vm402 = vcmask 7168
          %403 = vst.msk [vmem:[%s279] sm:$0xff] %vm402, %v401
          %v404 = vsel %vm399, %v378, %v398
          %405 = vst.msk [vmem:[%s271] sm:$0xff] %vm402, %v404
        $region40: #{tpu_custom_call.1} parent=27 // pred_fallthru
          _
        %s406 = sand.u32 %s104, 1
        %s407 = scalar_lea.sflag [#allocation3], %s406
        %s408 = sand.u32 %s104, 1
        %s409 = smul.addr %s408, 8
        %s410 = scalar_lea.vmem [#allocation2], %s409
        %s411 = smul.u32 %s24, 2
        %s412 = sadd.s32 %s411, %s25
        %p413 = scmp.lt.s32.totalorder %s412, 1
        %s414 = scalar_select %p413, %s412, 1
        %s415 = smul.addr %s414, 8
        %s416 = scalar_lea.vmem %s3, %s415
        %s417 = smul.u32 %s24, 2
        %s418 = sadd.s32 %s417, %s25
        %p419 = scmp.lt.s32.totalorder %s418, 1
        %s420 = scalar_select %p419, %s418, 1
        %s421 = smul.addr %s420, 8
        %s422 = scalar_lea.vmem %s4, %s421
        // Predicated region
        $region41: #{tpu_custom_call.1} parent=27 // pred_check
          %p423 = pneg %p114
        $region42: #{tpu_custom_call.1} parent=27 // pred_check_branch
          %425 = sbr.rel (%p423) target = $region44
        $region43: #{tpu_custom_call.1} parent=27 // pred_region
          %s426 = sadd.s32 %s24, %s26
          %s428 = ssub.s32 128, 128
          %429 = vsyncadd %s407, %s428
          %s430 = sadd.s32 %s426, %s25
          %s431 = smul.addr %s430, 128
          %s432 = scalar_lea.hbm %s2, %s431
          %s434 = sshll.u32 %s410, 4
          %s435 = int_to_ptr.vmem [resolvable:$true] %s434
          %437 = dma.vmem_to_hbm [thread:$0]  %s435, 128, %s432, %s407
        $region44: #{tpu_custom_call.1} parent=27 // pred_fallthru
          _
        // Predicated region
        $region45: #{tpu_custom_call.1} parent=27 // pred_check
          %p438 = pneg %p144
        $region46: #{tpu_custom_call.1} parent=27 // pred_check_branch
          %440 = sbr.rel (%p438) target = $region48
        $region47: #{tpu_custom_call.1} parent=27 // pred_region
          %s441 = smul.u32 %s24, 2
          %s442 = sadd.s32 %s441, %s25
        $region48: #{tpu_custom_call.1} parent=27 // pred_fallthru
          _
        // Predicated region
        $region49: #{tpu_custom_call.1} parent=27 // pred_check
          %p443 = pneg %p174
        $region50: #{tpu_custom_call.1} parent=27 // pred_check_branch
          %445 = sbr.rel (%p443) target = $region52
        $region51: #{tpu_custom_call.1} parent=27 // pred_region
          %s446 = smul.u32 %s24, 2
          %s447 = sadd.s32 %s446, %s25
        $region52: #{tpu_custom_call.1} parent=27 // pred_fallthru
          _
      $region28: #{tpu_custom_call.1} parent=5 // pred_fallthru
        _
      %p448 = scmp.le.s32.totalorder 2, %s14
      // Predicated region
      $region53: #{tpu_custom_call.1} parent=5 // pred_check
        %p449 = pneg %p448
      $region54: #{tpu_custom_call.1} parent=5 // pred_check_branch
        %451 = sbr.rel (%p449) target = $region56
      $region55: #{tpu_custom_call.1} parent=5 // pred_region
        %s452 = ssub.s32 %s14, 2
        // Predicated region
        $region57: #{tpu_custom_call.1} parent=55 // pred_check
          %p453 = pneg %p120
        $region58: #{tpu_custom_call.1} parent=55 // pred_check_branch
          %455 = sbr.rel (%p453) target = $region60
        $region59: #{tpu_custom_call.1} parent=55 // pred_region
          %s456 = sand.u32 %s105, 1
          %s457 = scalar_lea.sflag [#allocation3], %s456
          %s458 = sand.u32 %s105, 1
          %s459 = smul.addr %s458, 8
          %s460 = scalar_lea.vmem [#allocation2], %s459
          %461 = dma.done %s457, 128
        $region60: #{tpu_custom_call.1} parent=55 // pred_fallthru
          _
        // Predicated region
        $region61: #{tpu_custom_call.1} parent=55 // pred_check
          %p462 = pneg %p150
        $region62: #{tpu_custom_call.1} parent=55 // pred_check_branch
          %464 = sbr.rel (%p462) target = $region64
        $region63: #{tpu_custom_call.1} parent=55 // pred_region
          %s465 = smul.u32 %s27, 2
          %s466 = sadd.s32 %s465, %s28
          %p467 = scmp.lt.s32.totalorder %s466, 1
          %s468 = scalar_select %p467, %s466, 1
          %s469 = smul.addr %s468, 8
          %s470 = scalar_lea.vmem %s3, %s469
        $region64: #{tpu_custom_call.1} parent=55 // pred_fallthru
          _
        // Predicated region
        $region65: #{tpu_custom_call.1} parent=55 // pred_check
          %p471 = pneg %p180
        $region66: #{tpu_custom_call.1} parent=55 // pred_check_branch
          %473 = sbr.rel (%p471) target = $region68
        $region67: #{tpu_custom_call.1} parent=55 // pred_region
          %s474 = smul.u32 %s27, 2
          %s475 = sadd.s32 %s474, %s28
          %p476 = scmp.lt.s32.totalorder %s475, 1
          %s477 = scalar_select %p476, %s475, 1
          %s478 = smul.addr %s477, 8
          %s479 = scalar_lea.vmem %s4, %s478
        $region68: #{tpu_custom_call.1} parent=55 // pred_fallthru
          _
      $region56: #{tpu_custom_call.1} parent=5 // pred_fallthru
        _
    $region6: #{tpu_custom_call.1} parent=1 // loop_footer
      %s18 = sadd.s32 1, %s14
    $region7: #{tpu_custom_call.1} parent=1 // loop_footer_branch
      %13 = sbr.rel target = $region3
    $region8: #{tpu_custom_call.1} parent=1 // loop_exit
      _
    %480 = vsyncpa [#allocation3], 1
    %s481 = scalar_lea.sflag [#allocation3], 1
    %482 = vsyncpa %s481, 1

</llo_original>
